<compile_context>
chip_gen: v7x
topology: tpu7x:2x2x1
jax: 0.10.0
libtpu: 0.0.40
codegen_flags: <defaults>
</compile_context>

<pallas_src>
import math

import jax
import jax.numpy as jnp
from jax.experimental import pallas as pl
from jax.experimental.pallas import tpu as pltpu


def _round_up(x: int, m: int) -> int:
    return -(-x // m) * m


def _round_down(x: int, m: int) -> int:
    return (x // m) * m


def build_pe_table(d_model: int, max_len: int = 1000) -> jnp.ndarray:
    """Deterministic positional-encoding table, shape (max_len, d_model), f32.

    Matches the PyTorch construction; additionally safe for odd d_model
    (cos half is truncated to floor(d_model/2) columns).
    """
    position = jnp.arange(0, max_len, dtype=jnp.float32)[:, None]            # (max_len, 1)
    div_term = jnp.exp(
        jnp.arange(0, d_model, 2, dtype=jnp.float32) * (-math.log(10000.0) / d_model)
    )                                                                         # (ceil(d/2),)
    angles = position * div_term                                              # (max_len, ceil(d/2))
    pe = jnp.zeros((max_len, d_model), dtype=jnp.float32)
    pe = pe.at[:, 0::2].set(jnp.sin(angles))
    pe = pe.at[:, 1::2].set(jnp.cos(angles)[:, : d_model // 2])
    return pe


def prepare_pe(pe_table: jnp.ndarray, batch: int, dtype) -> jnp.ndarray:
    """One-time (init) prep: broadcast pe over batch into the flattened
    (max_len, batch*d_model) lane-dense layout and cast to the model dtype.

    Row s becomes [pe[s], pe[s], ..., pe[s]] (batch copies), which lines up
    with x.reshape(S, B*D) row layout [x[s,0,:], x[s,1,:], ...].
    """
    return jnp.tile(pe_table, (1, batch)).astype(dtype)                       # (max_len, B*D)


def _pos_enc_kernel(x_ref, pe_ref, o_ref):
    # x_ref, pe_ref, o_ref: (TS, B*D) tiles, all in the model dtype.
    o_ref[...] = (x_ref[...] + pe_ref[...]).astype(o_ref.dtype)


def positional_encoding(x: jnp.ndarray, pe_flat: jnp.ndarray) -> jnp.ndarray:
    """x: (S, B, D); pe_flat: (max_len, B*D) prepared by prepare_pe.

    Returns x + pe[:S] broadcast over batch, same shape/dtype as x.
    """
    S, B, D = x.shape
    max_len, BD = pe_flat.shape
    assert BD == B * D, f"pe_flat last dim {BD} != B*D {B * D} (re-run prepare_pe)"
    assert S <= max_len, f"sequence length {S} exceeds positional table max_len {max_len}"
    assert pe_flat.dtype == x.dtype, "prepare_pe must be called with the model dtype"

    x2 = x.reshape(S, B * D)  # free: contiguous row-major reshape

    # --- tile sizing from the *padded* VMEM footprint -------------------------
    itemsize = jnp.dtype(x.dtype).itemsize
    sublane_pack = max(8, 32 // itemsize)            # 8 f32 / 16 bf16 / 32 int8
    lane_padded = _round_up(B * D, 128)
    bytes_per_row_vmem = lane_padded * itemsize

    # ~4 MiB tiles: big enough to sit at the HBM roofline, small enough that
    # the 6 double-buffered tiles (x, pe, out) stay well inside every
    # generation's VMEM. (On v7x alone, ~8 MiB shaves a few % more; kept
    # conservative for portability.)
    target_tile_bytes = 4 * 1024 * 1024
    max_rows = max(1, target_tile_bytes // bytes_per_row_vmem)

    if max_rows >= S:
        # Whole input fits in one tile.  Still try to split into two
        # sublane-aligned blocks so the parallel grid axis can use both
        # v7x TensorCores; otherwise take a single full-extent block.
        half_aligned = _round_up(-(-S // 2), sublane_pack)
        TS = half_aligned if half_aligned < S else S
    else:
        TS = max(sublane_pack, _round_down(max_rows, sublane_pack))
        TS = min(TS, S)
    num_tiles = pl.cdiv(S, TS)

    # --- VMEM budget: 3 streamed operands, double-buffered, + margin ----------
    ts_padded = _round_up(TS, sublane_pack)
    tile_bytes = ts_padded * lane_padded * itemsize
    vmem_need = 2 * 3 * tile_bytes + (4 << 20)
    vmem_limit = int(min(48 << 20, max(vmem_need, 16 << 20)))

    out2 = pl.pallas_call(
        _pos_enc_kernel,
        out_shape=jax.ShapeDtypeStruct((S, B * D), x.dtype),
        grid_spec=pltpu.PrefetchScalarGridSpec(
            num_scalar_prefetch=0,
            grid=(num_tiles,),
            in_specs=[
                pl.BlockSpec((TS, B * D), lambda s: (s, 0)),
                pl.BlockSpec((TS, B * D), lambda s: (s, 0)),  # only first ceil(S/TS) blocks of pe touched
            ],
            out_specs=pl.BlockSpec((TS, B * D), lambda s: (s, 0)),
        ),
        compiler_params=pltpu.CompilerParams(
            dimension_semantics=("parallel",),
            vmem_limit_bytes=vmem_limit,
        ),
    )(x2, pe_flat)

    return out2.reshape(S, B, D)


if __name__ == "__main__":
    # Small shapes consistent with the module: seq=8, batch=2, d_model=32
    S, B, D = 8, 2, 32
    key = jax.random.PRNGKey(0)
    x = jax.random.normal(key, (S, B, D), dtype=jnp.float32)

    # Init-time work (mirrors the PyTorch __init__ buffer registration).
    pe_table = build_pe_table(d_model=D, max_len=1000)        # (max_len, D) f32
    pe_flat = prepare_pe(pe_table, batch=B, dtype=x.dtype)    # (max_len, B*D), model dtype

    out = positional_encoding(x, pe_flat)
    out = jax.block_until_ready(out)

    # Reference: same math as PyTorch forward (broadcast over batch).
    ref = x + pe_table[:S][:, None, :].astype(x.dtype)
    assert out.shape == (S, B, D)
    assert jnp.allclose(out, ref, atol=1e-6), "mismatch vs reference"

    print("KERNEL_OK")
</pallas_src>

<mosaic_0001>
module attributes {stable_mosaic.version = 11 : i64} {
  func.func @_pos_enc_kernel(%arg0: i32, %arg1: memref<8x64xf32, #tpu.memory_space<vmem>>, %arg2: memref<8x64xf32, #tpu.memory_space<vmem>>, %arg3: memref<8x64xf32, #tpu.memory_space<vmem>>) attributes {dimension_semantics = [#tpu.dimension_semantics<parallel>], iteration_bounds = array<i64: 1>, scalar_prefetch = 0 : i64, scratch_operands = 0 : i64, tpu.core_type = #tpu.core_type<tc>, window_params = [{transform_indices = @transform_0, window_bounds = array<i64: 8, 64>}, {transform_indices = @transform_1, window_bounds = array<i64: 8, 64>}, {transform_indices = @transform_2, window_bounds = array<i64: 8, 64>}]} {
    %c0 = arith.constant 0 : index
    %c0_0 = arith.constant 0 : index
    %0 = vector.load %arg1[%c0, %c0_0] : memref<8x64xf32, #tpu.memory_space<vmem>>, vector<8x64xf32>
    %c0_1 = arith.constant 0 : index
    %c0_2 = arith.constant 0 : index
    %1 = vector.load %arg2[%c0_1, %c0_2] : memref<8x64xf32, #tpu.memory_space<vmem>>, vector<8x64xf32>
    %2 = arith.addf %0, %1 : vector<8x64xf32>
    %c0_3 = arith.constant 0 : index
    %c0_4 = arith.constant 0 : index
    %3 = vector.load %arg3[%c0_3, %c0_4] : memref<8x64xf32, #tpu.memory_space<vmem>>, vector<8x64xf32>
    tpu.vector_store %arg3[%c0_3, %c0_4], %2 {strides = array<i32>} : memref<8x64xf32, #tpu.memory_space<vmem>>, vector<8x64xf32>,
    return
  }
  func.func @transform_0(%arg0: i32) -> (i32, i32) {
    %c0_i32 = arith.constant 0 : i32
    %c0_i32_0 = arith.constant 0 : i32
    return %arg0, %c0_i32 : i32, i32
  }
  func.func @transform_1(%arg0: i32) -> (i32, i32) {
    %c0_i32 = arith.constant 0 : i32
    %c0_i32_0 = arith.constant 0 : i32
    return %arg0, %c0_i32 : i32, i32
  }
  func.func @transform_2(%arg0: i32) -> (i32, i32) {
    %c0_i32 = arith.constant 0 : i32
    %c0_i32_0 = arith.constant 0 : i32
    return %arg0, %c0_i32 : i32, i32
  }
}

</mosaic_0001>

<llo_original>
// kernel: tpu_custom_call.1
$region0: #{tpu_custom_call.1}
  #allocation0 [shape = 'u32[]', space=smem, size = 0x4, offset = 0x4, fixed_abs, tag = 'smem constant byte address 0x4 - core index']
  #allocation1 [shape = 'u32[144,128]{1,0:T(1,128)}', space=vmem, size = 0x12000, scoped, tag = 'internal scratch']
  %s0 = inlined_call_operand.vmem [shape: f32[8,64], index: 0, kind: input, shape index: {}]
  %s1 = inlined_call_operand.vmem [shape: f32[1000,64], index: 1, kind: input, shape index: {}]
  %s2 = inlined_call_operand.hbm [shape: f32[8,64], index: 2, kind: output, shape index: {}]
  %s3 = sld [smem:[#allocation0]]
  $region18: #{tpu_custom_call.1} parent=0
    _
  %s5 = ssub.s32 1, %s3
  %s6 = scalar_select 0, %s5, %s3
  $region1: #{tpu_custom_call.1} parent=0
    #allocation2 [shape = 'u8[4096]{0}', space=vmem, size = 0x1000, scoped, tag = 'output window, operand 0, single buffered']
    #allocation3 [shape = 's32[1]{0}', space=sflag, size = 0x4, scoped, tag = 'scoped memory for tpu_custom_call.1']
    %7 = vsyncpa [#allocation3], 0
    // Predicated region
    $region2: #{tpu_custom_call.1} parent=1 // pred_check
      _
    $region3: #{tpu_custom_call.1} parent=1 // pred_check_branch
      %9 = sbr.rel (0) target = $region5
    $region4: #{tpu_custom_call.1} parent=1 // pred_region
      _
    $region5: #{tpu_custom_call.1} parent=1 // pred_fallthru
      _
    // Predicated region
    $region6: #{tpu_custom_call.1} parent=1 // pred_check
      _
    $region7: #{tpu_custom_call.1} parent=1 // pred_check_branch
      %11 = sbr.rel (0) target = $region9
    $region8: #{tpu_custom_call.1} parent=1 // pred_region
      _
    $region9: #{tpu_custom_call.1} parent=1 // pred_fallthru
      _
    %v12 = vld [vmem:[%s0] sm:$0xff]
    %v13 = vld [vmem:[%s1] sm:$0xff]
    %v14 = vadd.f32 %v12, %v13
    %vm15 = vcmask 523264
    %16 = vst.msk [vmem:[#allocation2] sm:$0xff] %vm15, %v14
    // Predicated region
    $region10: #{tpu_custom_call.1} parent=1 // pred_check
      _
    $region11: #{tpu_custom_call.1} parent=1 // pred_check_branch
      %18 = sbr.rel (0) target = $region13
    $region12: #{tpu_custom_call.1} parent=1 // pred_region
      %s20 = ssub.s32 128, 128
      %21 = vsyncadd [#allocation3], %s20
      %s23 = sshll.u32 [#allocation2], 4
      %s24 = int_to_ptr.vmem [resolvable:$true] %s23
      %26 = dma.vmem_to_hbm [thread:$0]  %s24, 128, %s2, [#allocation3]
    $region13: #{tpu_custom_call.1} parent=1 // pred_fallthru
      _
    // Predicated region
    $region14: #{tpu_custom_call.1} parent=1 // pred_check
      _
    $region15: #{tpu_custom_call.1} parent=1 // pred_check_branch
      %28 = sbr.rel (0) target = $region17
    $region16: #{tpu_custom_call.1} parent=1 // pred_region
      %29 = dma.done [#allocation3], 128
    $region17: #{tpu_custom_call.1} parent=1 // pred_fallthru
      _
    %30 = vsyncpa [#allocation3], 1

</llo_original>
